<compile_context>
chip_gen: v5e
topology: v5e:2x2
jax: 0.10.0
libtpu: 0.0.40
codegen_flags: <defaults>
</compile_context>

<pallas_src>
import functools
import math

import jax
import jax.numpy as jnp
from jax import lax
from jax.experimental import pallas as pl
from jax.experimental.pallas import tpu as pltpu


def _flash_attn_head_kernel(x_ref, wq_ref, bq_ref, wk_ref, bk_ref,
                            wv_ref, bv_ref, wp_ref, bp_ref, o_ref,
                            m_scr, l_scr, acc_scr, out_acc,
                            *, tile, compute_dtype):
    """One grid step == one (batch, q-tile, head) triple. Head axis innermost."""
    qi = pl.program_id(1)
    h = pl.program_id(2)
    n_head = pl.num_programs(2)
    hd = wq_ref.shape[2]
    scale = 1.0 / math.sqrt(hd)
    neg_big = jnp.float32(-1e30)

    # Zero the cross-head output accumulator at the first head of this q-tile.
    @pl.when(h == 0)
    def _():
        out_acc[...] = jnp.zeros(out_acc.shape, dtype=jnp.float32)

    # ---- Q projection for this (batch, q-tile, head): (tile, C) @ (C, hd) ----
    q_start = pl.multiple_of(qi * tile, tile)
    x_q = x_ref[0, pl.ds(q_start, tile), :]                     # (tile, C) bf16
    q = jnp.dot(x_q, wq_ref[0], preferred_element_type=jnp.float32)
    q = ((q + bq_ref[0]) * scale).astype(compute_dtype)         # fold 1/sqrt(hd) into q

    # ---- init running softmax state for this head ----
    m_scr[...] = jnp.full(m_scr.shape, neg_big, dtype=jnp.float32)
    l_scr[...] = jnp.zeros(l_scr.shape, dtype=jnp.float32)
    acc_scr[...] = jnp.zeros(acc_scr.shape, dtype=jnp.float32)

    row = q_start + lax.broadcasted_iota(jnp.int32, (tile, tile), 0)

    def kv_step(j, carry):
        kv_start = pl.multiple_of(j * tile, tile)
        x_kv = x_ref[0, pl.ds(kv_start, tile), :]               # (tile, C) bf16
        k = (jnp.dot(x_kv, wk_ref[0], preferred_element_type=jnp.float32)
             + bk_ref[0]).astype(compute_dtype)                 # (tile, hd)
        v = (jnp.dot(x_kv, wv_ref[0], preferred_element_type=jnp.float32)
             + bv_ref[0]).astype(compute_dtype)                 # (tile, hd)

        # q (tile, hd) x k (tile, hd), contracting hd on both operands:
        # no materialized k transpose.
        s = lax.dot_general(q, k, (((1,), (1,)), ((), ())),
                            preferred_element_type=jnp.float32)  # (tile, tile)

        # Additive causal bias (finite, so exp() can never produce NaN).
        col = kv_start + lax.broadcasted_iota(jnp.int32, (tile, tile), 1)
        s = s + jnp.where(row >= col, 0.0, neg_big)

        # Online (flash) softmax update.
        m_prev = m_scr[...]
        m_new = jnp.maximum(m_prev, jnp.max(s, axis=-1, keepdims=True))
        alpha = jnp.exp(m_prev - m_new)
        p = jnp.exp(s - m_new)
        l_scr[...] = alpha * l_scr[...] + jnp.sum(p, axis=-1, keepdims=True)
        acc_scr[...] = alpha * acc_scr[...] + jnp.dot(
            p.astype(compute_dtype), v, preferred_element_type=jnp.float32)
        m_scr[...] = m_new
        return carry

    # Causal structure: q-tile qi only attends to kv tiles 0..qi, so the
    # fully-masked upper-triangular KV tiles are skipped entirely.
    lax.fori_loop(0, qi + 1, kv_step, 0)

    inv_l = pl.reciprocal(l_scr[...], approx=True)
    y_h = (acc_scr[...] * inv_l).astype(compute_dtype)          # (tile, hd)

    # Per-head contribution to the output projection, accumulated over heads.
    out_acc[...] += jnp.dot(y_h, wp_ref[0], preferred_element_type=jnp.float32)

    @pl.when(h == n_head - 1)
    def _():
        o_ref[0] = (out_acc[...] + bp_ref[...]).astype(o_ref.dtype)


def _pick_q_tile(T, target):
    """Largest tile <= target that divides T and is a multiple of 8 (or T itself)."""
    if T <= target:
        return T
    for cand in range(min(target, T), 7, -1):
        if T % cand == 0 and cand % 8 == 0:
            return cand
    return T


def causal_self_attention(x, w_attn_t, b_attn, w_proj_t, b_proj, n_head,
                          *, q_tile=512, compute_dtype=jnp.bfloat16):
    B, T, C = x.shape
    assert C % n_head == 0
    hd = C // n_head
    tile = _pick_q_tile(T, q_tile)
    num_q = T // tile
    f32 = jnp.float32

    # Reshape fused weights so BlockSpec / DMA does the head split (no lane
    # slicing inside the kernel).
    wq = w_attn_t[:, 0 * C:1 * C].reshape(C, n_head, hd).transpose(1, 0, 2)
    wk = w_attn_t[:, 1 * C:2 * C].reshape(C, n_head, hd).transpose(1, 0, 2)
    wv = w_attn_t[:, 2 * C:3 * C].reshape(C, n_head, hd).transpose(1, 0, 2)
    bq = b_attn[0 * C:1 * C].reshape(n_head, 1, hd).astype(f32)
    bk = b_attn[1 * C:2 * C].reshape(n_head, 1, hd).astype(f32)
    bv = b_attn[2 * C:3 * C].reshape(n_head, 1, hd).astype(f32)
    wp = w_proj_t.reshape(n_head, hd, C)
    bp = b_proj.reshape(1, C).astype(f32)

    # bf16 MXU path with f32 accumulation.
    x_c = x.astype(compute_dtype)
    wq, wk, wv, wp = (w.astype(compute_dtype) for w in (wq, wk, wv, wp))

    kernel = functools.partial(_flash_attn_head_kernel, tile=tile,
                               compute_dtype=compute_dtype)
    head_spec = lambda b, qi, h: (h, 0, 0)

    return pl.pallas_call(
        kernel,
        out_shape=jax.ShapeDtypeStruct((B, T, C), x.dtype),
        grid=(B, num_q, n_head),
        in_specs=[
            pl.BlockSpec((1, T, C), lambda b, qi, h: (b, 0, 0)),   # x, resident per batch
            pl.BlockSpec((1, C, hd), head_spec),                   # Wq (per head)
            pl.BlockSpec((1, 1, hd), head_spec),                   # bq
            pl.BlockSpec((1, C, hd), head_spec),                   # Wk
            pl.BlockSpec((1, 1, hd), head_spec),                   # bk
            pl.BlockSpec((1, C, hd), head_spec),                   # Wv
            pl.BlockSpec((1, 1, hd), head_spec),                   # bv
            pl.BlockSpec((1, hd, C), head_spec),                   # Wproj slice (per head)
            pl.BlockSpec((1, C), lambda b, qi, h: (0, 0)),         # bproj
        ],
        out_specs=pl.BlockSpec((1, tile, C), lambda b, qi, h: (b, qi, 0)),
        scratch_shapes=[
            pltpu.VMEM((tile, 1), jnp.float32),    # running max
            pltpu.VMEM((tile, 1), jnp.float32),    # running sum
            pltpu.VMEM((tile, hd), jnp.float32),   # per-head flash accumulator
            pltpu.VMEM((tile, C), jnp.float32),    # cross-head output accumulator
        ],
        compiler_params=pltpu.CompilerParams(
            dimension_semantics=("parallel", "parallel", "arbitrary"),
            vmem_limit_bytes=48 * 1024 * 1024),
    )(x_c, wq, bq, wk, bk, wv, bv, wp, bp)


def reference(x, w_attn_t, b_attn, w_proj_t, b_proj, n_head):
    """Pure-JAX f32 reference mirroring the PyTorch forward."""
    B, T, C = x.shape
    hd = C // n_head
    qkv = x @ w_attn_t + b_attn
    q, k, v = jnp.split(qkv, 3, axis=2)
    q = q.reshape(B, T, n_head, hd).transpose(0, 2, 1, 3)
    k = k.reshape(B, T, n_head, hd).transpose(0, 2, 1, 3)
    v = v.reshape(B, T, n_head, hd).transpose(0, 2, 1, 3)
    s = jnp.einsum("bhqd,bhkd->bhqk", q, k) / math.sqrt(hd)
    mask = jnp.tril(jnp.ones((T, T), dtype=bool))
    s = jnp.where(mask[None, None], s, -jnp.inf)
    p = jax.nn.softmax(s, axis=-1)
    y = jnp.einsum("bhqk,bhkd->bhqd", p, v)
    y = y.transpose(0, 2, 1, 3).reshape(B, T, C)
    return y @ w_proj_t + b_proj


if __name__ == "__main__":
    # Small config consistent with the module: C % n_head == 0.
    B, T, C, n_head = 2, 8, 32, 4

    key = jax.random.PRNGKey(0)
    kx, k1, k2, k3, k4 = jax.random.split(key, 5)

    x = jax.random.normal(kx, (B, T, C), dtype=jnp.float32)
    # nn.Linear shapes: c_attn (3C, C), c_proj (C, C), stored pre-transposed (in, out).
    w_attn_t = jax.random.normal(k1, (C, 3 * C), dtype=jnp.float32) * 0.02
    b_attn = jax.random.normal(k2, (3 * C,), dtype=jnp.float32) * 0.02
    w_proj_t = jax.random.normal(k3, (C, C), dtype=jnp.float32) * 0.02
    b_proj = jax.random.normal(k4, (C,), dtype=jnp.float32) * 0.02

    out = causal_self_attention(x, w_attn_t, b_attn, w_proj_t, b_proj, n_head)
    out = jax.block_until_ready(out)

    # Compare against an f32 reference computed on the same bf16-rounded operands
    # the kernel consumes (bf16 matmul path => loosened tolerance).
    bf = lambda a: a.astype(jnp.bfloat16).astype(jnp.float32)
    ref = reference(bf(x), bf(w_attn_t), b_attn, bf(w_proj_t), b_proj, n_head)

    assert out.shape == (B, T, C)
    assert out.dtype == x.dtype
    max_err = float(jnp.max(jnp.abs(out - ref)))
    assert jnp.allclose(out, ref, atol=1e-2, rtol=1e-2), f"mismatch vs reference: {max_err}"

    print("KERNEL_OK")
</pallas_src>

<mosaic_0001>
module attributes {stable_mosaic.version = 11 : i64} {
  func.func @_flash_attn_head_kernel(%arg0: i32, %arg1: i32, %arg2: i32, %arg3: memref<1x8x32xbf16, #tpu.memory_space<vmem>>, %arg4: memref<1x32x8xbf16, #tpu.memory_space<vmem>>, %arg5: memref<1x1x8xf32, #tpu.memory_space<vmem>>, %arg6: memref<1x32x8xbf16, #tpu.memory_space<vmem>>, %arg7: memref<1x1x8xf32, #tpu.memory_space<vmem>>, %arg8: memref<1x32x8xbf16, #tpu.memory_space<vmem>>, %arg9: memref<1x1x8xf32, #tpu.memory_space<vmem>>, %arg10: memref<1x8x32xbf16, #tpu.memory_space<vmem>>, %arg11: memref<1x32xf32, #tpu.memory_space<vmem>>, %arg12: memref<1x8x32xf32, #tpu.memory_space<vmem>>, %arg13: memref<8x1xf32, #tpu.memory_space<vmem>>, %arg14: memref<8x1xf32, #tpu.memory_space<vmem>>, %arg15: memref<8x8xf32, #tpu.memory_space<vmem>>, %arg16: memref<8x32xf32, #tpu.memory_space<vmem>>) attributes {dimension_semantics = [#tpu.dimension_semantics<parallel>, #tpu.dimension_semantics<parallel>, #tpu.dimension_semantics<arbitrary>], iteration_bounds = array<i64: 2, 1, 4>, scalar_prefetch = 0 : i64, scratch_operands = 4 : i64, tpu.core_type = #tpu.core_type<tc>, window_params = [{transform_indices = @transform_0, window_bounds = array<i64: 1, 8, 32>}, {transform_indices = @transform_1, window_bounds = array<i64: 1, 32, 8>}, {transform_indices = @transform_2, window_bounds = array<i64: 1, 1, 8>}, {transform_indices = @transform_3, window_bounds = array<i64: 1, 32, 8>}, {transform_indices = @transform_4, window_bounds = array<i64: 1, 1, 8>}, {transform_indices = @transform_5, window_bounds = array<i64: 1, 32, 8>}, {transform_indices = @transform_6, window_bounds = array<i64: 1, 1, 8>}, {transform_indices = @transform_7, window_bounds = array<i64: 1, 8, 32>}, {pipeline_mode = #tpu.pipeline_mode<synchronous>, transform_indices = @transform_8, window_bounds = array<i64: 1, 32>}, {transform_indices = @transform_9, window_bounds = array<i64: 1, 8, 32>}]} {
    %c0_i32 = arith.constant 0 : i32
    %0 = arith.cmpi eq, %arg2, %c0_i32 : i32
    %1 = arith.extui %0 : i1 to i32
    %c0_i32_0 = arith.constant 0 : i32
    %2 = arith.cmpi ne, %1, %c0_i32_0 : i32
    scf.if %2 {
      %cst_35 = arith.constant 0.000000e+00 : f32
      %45 = vector.broadcast %cst_35 : f32 to vector<8x32xf32>
      %c0_36 = arith.constant 0 : index
      %c0_37 = arith.constant 0 : index
      %46 = vector.load %arg16[%c0_36, %c0_37] : memref<8x32xf32, #tpu.memory_space<vmem>>, vector<8x32xf32>
      tpu.vector_store %arg16[%c0_36, %c0_37], %45 {strides = array<i32>} : memref<8x32xf32, #tpu.memory_space<vmem>>, vector<8x32xf32>,
    } else {
    }
    %c8_i32 = arith.constant 8 : i32
    %3 = arith.muli %arg1, %c8_i32 : i32
    %4 = tpu.assume_multiple %3, 8 : i32
    %c0 = arith.constant 0 : index
    %5 = arith.index_cast %4 : i32 to index
    %c0_1 = arith.constant 0 : index
    %6 = vector.load %arg3[%c0, %5, %c0_1] : memref<1x8x32xbf16, #tpu.memory_space<vmem>>, vector<1x8x32xbf16>
    %7 = vector.shape_cast %6 : vector<1x8x32xbf16> to vector<8x32xbf16>
    %c0_2 = arith.constant 0 : index
    %c0_3 = arith.constant 0 : index
    %c0_4 = arith.constant 0 : index
    %8 = vector.load %arg4[%c0_2, %c0_3, %c0_4] : memref<1x32x8xbf16, #tpu.memory_space<vmem>>, vector<1x32x8xbf16>
    %9 = vector.shape_cast %8 : vector<1x32x8xbf16> to vector<32x8xbf16>
    %cst = arith.constant dense<0.000000e+00> : vector<8x8xf32>
    %10 = tpu.matmul %7, %9, %cst {dimension_numbers = #tpu.dot_dimension_numbers<[1], [0], [0], [1], [0, 0, 1, 1], [], []>} : vector<8x32xbf16>, vector<32x8xbf16>, vector<8x8xf32> -> vector<8x8xf32>
    %c0_5 = arith.constant 0 : index
    %c0_6 = arith.constant 0 : index
    %c0_7 = arith.constant 0 : index
    %11 = vector.load %arg5[%c0_5, %c0_6, %c0_7] : memref<1x1x8xf32, #tpu.memory_space<vmem>>, vector<1x1x8xf32>
    %12 = vector.shape_cast %11 : vector<1x1x8xf32> to vector<1x8xf32>
    %13 = vector.broadcast %12 : vector<1x8xf32> to vector<8x8xf32>
    %14 = arith.addf %10, %13 : vector<8x8xf32>
    %cst_8 = arith.constant 0.353553385 : f32
    %15 = vector.broadcast %cst_8 : f32 to vector<8x8xf32>
    %16 = arith.mulf %14, %15 : vector<8x8xf32>
    %17 = arith.truncf %16 : vector<8x8xf32> to vector<8x8xbf16>
    %cst_9 = arith.constant -1.000000e+30 : f32
    %18 = vector.broadcast %cst_9 : f32 to vector<8x1xf32>
    %c0_10 = arith.constant 0 : index
    %c0_11 = arith.constant 0 : index
    %19 = vector.load %arg13[%c0_10, %c0_11] : memref<8x1xf32, #tpu.memory_space<vmem>>, vector<8x1xf32>
    tpu.vector_store %arg13[%c0_10, %c0_11], %18 {strides = array<i32>} : memref<8x1xf32, #tpu.memory_space<vmem>>, vector<8x1xf32>,
    %cst_12 = arith.constant 0.000000e+00 : f32
    %20 = vector.broadcast %cst_12 : f32 to vector<8x1xf32>
    %c0_13 = arith.constant 0 : index
    %c0_14 = arith.constant 0 : index
    %21 = vector.load %arg14[%c0_13, %c0_14] : memref<8x1xf32, #tpu.memory_space<vmem>>, vector<8x1xf32>
    tpu.vector_store %arg14[%c0_13, %c0_14], %20 {strides = array<i32>} : memref<8x1xf32, #tpu.memory_space<vmem>>, vector<8x1xf32>,
    %cst_15 = arith.constant 0.000000e+00 : f32
    %22 = vector.broadcast %cst_15 : f32 to vector<8x8xf32>
    %c0_16 = arith.constant 0 : index
    %c0_17 = arith.constant 0 : index
    %23 = vector.load %arg15[%c0_16, %c0_17] : memref<8x8xf32, #tpu.memory_space<vmem>>, vector<8x8xf32>
    tpu.vector_store %arg15[%c0_16, %c0_17], %22 {strides = array<i32>} : memref<8x8xf32, #tpu.memory_space<vmem>>, vector<8x8xf32>,
    %24 = tpu.iota {dimensions = array<i32: 0>} : vector<8x8xi32>
    %25 = vector.broadcast %4 : i32 to vector<8x8xi32>
    %26 = arith.addi %25, %24 : vector<8x8xi32>
    %c1_i32 = arith.constant 1 : i32
    %27 = arith.addi %arg1, %c1_i32 : i32
    %c0_i32_18 = arith.constant 0 : i32
    %cst_19 = arith.constant -1.000000e+30 : f32
    %c0_i32_20 = arith.constant 0 : i32
    %28 = arith.subi %27, %c0_i32_20 : i32
    %29 = arith.addi %c0_i32_20, %28 : i32
    %c1_i32_21 = arith.constant 1 : i32
    scf.for %arg17 = %c0_i32_20 to %29 step %c1_i32_21  : i32 {
      %c8_i32_35 = arith.constant 8 : i32
      %45 = arith.muli %arg17, %c8_i32_35 : i32
      %46 = tpu.assume_multiple %45, 8 : i32
      %c0_36 = arith.constant 0 : index
      %47 = arith.index_cast %46 : i32 to index
      %c0_37 = arith.constant 0 : index
      %48 = vector.load %arg3[%c0_36, %47, %c0_37] : memref<1x8x32xbf16, #tpu.memory_space<vmem>>, vector<1x8x32xbf16>
      %49 = vector.shape_cast %48 : vector<1x8x32xbf16> to vector<8x32xbf16>
      %c0_38 = arith.constant 0 : index
      %c0_39 = arith.constant 0 : index
      %c0_40 = arith.constant 0 : index
      %50 = vector.load %arg6[%c0_38, %c0_39, %c0_40] : memref<1x32x8xbf16, #tpu.memory_space<vmem>>, vector<1x32x8xbf16>
      %51 = vector.shape_cast %50 : vector<1x32x8xbf16> to vector<32x8xbf16>
      %cst_41 = arith.constant dense<0.000000e+00> : vector<8x8xf32>
      %52 = tpu.matmul %49, %51, %cst_41 {dimension_numbers = #tpu.dot_dimension_numbers<[1], [0], [0], [1], [0, 0, 1, 1], [], []>} : vector<8x32xbf16>, vector<32x8xbf16>, vector<8x8xf32> -> vector<8x8xf32>
      %c0_42 = arith.constant 0 : index
      %c0_43 = arith.constant 0 : index
      %c0_44 = arith.constant 0 : index
      %53 = vector.load %arg7[%c0_42, %c0_43, %c0_44] : memref<1x1x8xf32, #tpu.memory_space<vmem>>, vector<1x1x8xf32>
      %54 = vector.shape_cast %53 : vector<1x1x8xf32> to vector<1x8xf32>
      %55 = vector.broadcast %54 : vector<1x8xf32> to vector<8x8xf32>
      %56 = arith.addf %52, %55 : vector<8x8xf32>
      %57 = arith.truncf %56 : vector<8x8xf32> to vector<8x8xbf16>
      %c0_45 = arith.constant 0 : index
      %c0_46 = arith.constant 0 : index
      %c0_47 = arith.constant 0 : index
      %58 = vector.load %arg8[%c0_45, %c0_46, %c0_47] : memref<1x32x8xbf16, #tpu.memory_space<vmem>>, vector<1x32x8xbf16>
      %59 = vector.shape_cast %58 : vector<1x32x8xbf16> to vector<32x8xbf16>
      %cst_48 = arith.constant dense<0.000000e+00> : vector<8x8xf32>
      %60 = tpu.matmul %49, %59, %cst_48 {dimension_numbers = #tpu.dot_dimension_numbers<[1], [0], [0], [1], [0, 0, 1, 1], [], []>} : vector<8x32xbf16>, vector<32x8xbf16>, vector<8x8xf32> -> vector<8x8xf32>
      %c0_49 = arith.constant 0 : index
      %c0_50 = arith.constant 0 : index
      %c0_51 = arith.constant 0 : index
      %61 = vector.load %arg9[%c0_49, %c0_50, %c0_51] : memref<1x1x8xf32, #tpu.memory_space<vmem>>, vector<1x1x8xf32>
      %62 = vector.shape_cast %61 : vector<1x1x8xf32> to vector<1x8xf32>
      %63 = vector.broadcast %62 : vector<1x8xf32> to vector<8x8xf32>
      %64 = arith.addf %60, %63 : vector<8x8xf32>
      %65 = arith.truncf %64 : vector<8x8xf32> to vector<8x8xbf16>
      %cst_52 = arith.constant dense<0.000000e+00> : vector<8x8xf32>
      %66 = tpu.matmul %17, %57, %cst_52 {dimension_numbers = #tpu.dot_dimension_numbers<[1], [1], [0], [0], [0, 0, 1, 0], [], []>} : vector<8x8xbf16>, vector<8x8xbf16>, vector<8x8xf32> -> vector<8x8xf32>
      %67 = tpu.iota {dimensions = array<i32: 1>} : vector<8x8xi32>
      %68 = vector.broadcast %46 : i32 to vector<8x8xi32>
      %69 = arith.addi %68, %67 : vector<8x8xi32>
      %70 = arith.cmpi sge, %26, %69 : vector<8x8xi32>
      %cst_53 = arith.constant 0.000000e+00 : f32
      %71 = vector.broadcast %cst_53 : f32 to vector<8x8xf32>
      %72 = vector.broadcast %cst_19 : f32 to vector<8x8xf32>
      %73 = arith.select %70, %71, %72 : vector<8x8xi1>, vector<8x8xf32>
      %74 = arith.addf %66, %73 : vector<8x8xf32>
      %c0_54 = arith.constant 0 : index
      %c0_55 = arith.constant 0 : index
      %75 = vector.load %arg13[%c0_54, %c0_55] : memref<8x1xf32, #tpu.memory_space<vmem>>, vector<8x1xf32>
      %cst_56 = arith.constant dense<0xFF800000> : vector<8xf32>
      %76 = vector.multi_reduction <maximumf>, %74, %cst_56 [1] : vector<8x8xf32> to vector<8xf32>
      %77 = vector.shape_cast %76 : vector<8xf32> to vector<8x1xf32>
      %78 = arith.maximumf %75, %77 : vector<8x1xf32>
      %79 = arith.subf %75, %78 : vector<8x1xf32>
      %80 = math.exp %79 : vector<8x1xf32>
      %81 = vector.broadcast %78 : vector<8x1xf32> to vector<8x8xf32>
      %82 = arith.subf %74, %81 : vector<8x8xf32>
      %83 = math.exp %82 : vector<8x8xf32>
      %c0_57 = arith.constant 0 : index
      %c0_58 = arith.constant 0 : index
      %84 = vector.load %arg14[%c0_57, %c0_58] : memref<8x1xf32, #tpu.memory_space<vmem>>, vector<8x1xf32>
      %85 = arith.mulf %80, %84 : vector<8x1xf32>
      %cst_59 = arith.constant dense<0.000000e+00> : vector<8xf32>
      %86 = vector.multi_reduction <add>, %83, %cst_59 [1] : vector<8x8xf32> to vector<8xf32>
      %87 = vector.shape_cast %86 : vector<8xf32> to vector<8x1xf32>
      %88 = arith.addf %85, %87 : vector<8x1xf32>
      %c0_60 = arith.constant 0 : index
      %c0_61 = arith.constant 0 : index
      %89 = vector.load %arg14[%c0_60, %c0_61] : memref<8x1xf32, #tpu.memory_space<vmem>>, vector<8x1xf32>
      tpu.vector_store %arg14[%c0_60, %c0_61], %88 {strides = array<i32>} : memref<8x1xf32, #tpu.memory_space<vmem>>, vector<8x1xf32>,
      %c0_62 = arith.constant 0 : index
      %c0_63 = arith.constant 0 : index
      %90 = vector.load %arg15[%c0_62, %c0_63] : memref<8x8xf32, #tpu.memory_space<vmem>>, vector<8x8xf32>
      %91 = vector.broadcast %80 : vector<8x1xf32> to vector<8x8xf32>
      %92 = arith.mulf %91, %90 : vector<8x8xf32>
      %93 = arith.truncf %83 : vector<8x8xf32> to vector<8x8xbf16>
      %cst_64 = arith.constant dense<0.000000e+00> : vector<8x8xf32>
      %94 = tpu.matmul %93, %65, %cst_64 {dimension_numbers = #tpu.dot_dimension_numbers<[1], [0], [0], [1], [0, 0, 1, 1], [], []>} : vector<8x8xbf16>, vector<8x8xbf16>, vector<8x8xf32> -> vector<8x8xf32>
      %95 = arith.addf %92, %94 : vector<8x8xf32>
      %c0_65 = arith.constant 0 : index
      %c0_66 = arith.constant 0 : index
      %96 = vector.load %arg15[%c0_65, %c0_66] : memref<8x8xf32, #tpu.memory_space<vmem>>, vector<8x8xf32>
      tpu.vector_store %arg15[%c0_65, %c0_66], %95 {strides = array<i32>} : memref<8x8xf32, #tpu.memory_space<vmem>>, vector<8x8xf32>,
      %c0_67 = arith.constant 0 : index
      %c0_68 = arith.constant 0 : index
      %97 = vector.load %arg13[%c0_67, %c0_68] : memref<8x1xf32, #tpu.memory_space<vmem>>, vector<8x1xf32>
      tpu.vector_store %arg13[%c0_67, %c0_68], %78 {strides = array<i32>} : memref<8x1xf32, #tpu.memory_space<vmem>>, vector<8x1xf32>,
    }
    %c0_22 = arith.constant 0 : index
    %c0_23 = arith.constant 0 : index
    %30 = vector.load %arg14[%c0_22, %c0_23] : memref<8x1xf32, #tpu.memory_space<vmem>>, vector<8x1xf32>
    %31 = tpu.reciprocal %30 {approx = true} : vector<8x1xf32> -> vector<8x1xf32>
    %c0_24 = arith.constant 0 : index
    %c0_25 = arith.constant 0 : index
    %32 = vector.load %arg15[%c0_24, %c0_25] : memref<8x8xf32, #tpu.memory_space<vmem>>, vector<8x8xf32>
    %33 = vector.broadcast %31 : vector<8x1xf32> to vector<8x8xf32>
    %34 = arith.mulf %32, %33 : vector<8x8xf32>
    %35 = arith.truncf %34 : vector<8x8xf32> to vector<8x8xbf16>
    %c0_26 = arith.constant 0 : index
    %c0_27 = arith.constant 0 : index
    %36 = vector.load %arg16[%c0_26, %c0_27] : memref<8x32xf32, #tpu.memory_space<vmem>>, vector<8x32xf32>
    %c0_28 = arith.constant 0 : index
    %c0_29 = arith.constant 0 : index
    %c0_30 = arith.constant 0 : index
    %37 = vector.load %arg10[%c0_28, %c0_29, %c0_30] : memref<1x8x32xbf16, #tpu.memory_space<vmem>>, vector<1x8x32xbf16>
    %38 = vector.shape_cast %37 : vector<1x8x32xbf16> to vector<8x32xbf16>
    %cst_31 = arith.constant dense<0.000000e+00> : vector<8x32xf32>
    %39 = tpu.matmul %35, %38, %cst_31 {dimension_numbers = #tpu.dot_dimension_numbers<[1], [0], [0], [1], [0, 0, 1, 1], [], []>} : vector<8x8xbf16>, vector<8x32xbf16>, vector<8x32xf32> -> vector<8x32xf32>
    %40 = arith.addf %36, %39 : vector<8x32xf32>
    %c0_32 = arith.constant 0 : index
    %c0_33 = arith.constant 0 : index
    %41 = vector.load %arg16[%c0_32, %c0_33] : memref<8x32xf32, #tpu.memory_space<vmem>>, vector<8x32xf32>
    tpu.vector_store %arg16[%c0_32, %c0_33], %40 {strides = array<i32>} : memref<8x32xf32, #tpu.memory_space<vmem>>, vector<8x32xf32>,
    %c3_i32 = arith.constant 3 : i32
    %42 = arith.cmpi eq, %arg2, %c3_i32 : i32
    %43 = arith.extui %42 : i1 to i32
    %c0_i32_34 = arith.constant 0 : i32
    %44 = arith.cmpi ne, %43, %c0_i32_34 : i32
    scf.if %44 {
      %c0_35 = arith.constant 0 : index
      %c0_36 = arith.constant 0 : index
      %45 = vector.load %arg16[%c0_35, %c0_36] : memref<8x32xf32, #tpu.memory_space<vmem>>, vector<8x32xf32>
      %c0_37 = arith.constant 0 : index
      %c0_38 = arith.constant 0 : index
      %46 = vector.load %arg11[%c0_37, %c0_38] : memref<1x32xf32, #tpu.memory_space<vmem>>, vector<1x32xf32>
      %47 = vector.broadcast %46 : vector<1x32xf32> to vector<8x32xf32>
      %48 = arith.addf %45, %47 : vector<8x32xf32>
      %c0_39 = arith.constant 0 : index
      %c0_40 = arith.constant 0 : index
      %c0_41 = arith.constant 0 : index
      %49 = vector.load %arg12[%c0_39, %c0_40, %c0_41] : memref<1x8x32xf32, #tpu.memory_space<vmem>>, vector<1x8x32xf32>
      %50 = vector.shape_cast %49 : vector<1x8x32xf32> to vector<8x32xf32>
      %51 = vector.shape_cast %48 : vector<8x32xf32> to vector<1x8x32xf32>
      tpu.vector_store %arg12[%c0_39, %c0_40, %c0_41], %51 {strides = array<i32>} : memref<1x8x32xf32, #tpu.memory_space<vmem>>, vector<1x8x32xf32>,
    } else {
    }
    return
  }
  func.func @transform_0(%arg0: i32, %arg1: i32, %arg2: i32) -> (i32, i32, i32) {
    %c0_i32 = arith.constant 0 : i32
    %c0_i32_0 = arith.constant 0 : i32
    %c0_i32_1 = arith.constant 0 : i32
    return %arg0, %c0_i32, %c0_i32_0 : i32, i32, i32
  }
  func.func @transform_1(%arg0: i32, %arg1: i32, %arg2: i32) -> (i32, i32, i32) {
    %c0_i32 = arith.constant 0 : i32
    %c0_i32_0 = arith.constant 0 : i32
    %c0_i32_1 = arith.constant 0 : i32
    return %arg2, %c0_i32, %c0_i32_0 : i32, i32, i32
  }
  func.func @transform_2(%arg0: i32, %arg1: i32, %arg2: i32) -> (i32, i32, i32) {
    %c0_i32 = arith.constant 0 : i32
    %c0_i32_0 = arith.constant 0 : i32
    %c0_i32_1 = arith.constant 0 : i32
    return %arg2, %c0_i32, %c0_i32_0 : i32, i32, i32
  }
  func.func @transform_3(%arg0: i32, %arg1: i32, %arg2: i32) -> (i32, i32, i32) {
    %c0_i32 = arith.constant 0 : i32
    %c0_i32_0 = arith.constant 0 : i32
    %c0_i32_1 = arith.constant 0 : i32
    return %arg2, %c0_i32, %c0_i32_0 : i32, i32, i32
  }
  func.func @transform_4(%arg0: i32, %arg1: i32, %arg2: i32) -> (i32, i32, i32) {
    %c0_i32 = arith.constant 0 : i32
    %c0_i32_0 = arith.constant 0 : i32
    %c0_i32_1 = arith.constant 0 : i32
    return %arg2, %c0_i32, %c0_i32_0 : i32, i32, i32
  }
  func.func @transform_5(%arg0: i32, %arg1: i32, %arg2: i32) -> (i32, i32, i32) {
    %c0_i32 = arith.constant 0 : i32
    %c0_i32_0 = arith.constant 0 : i32
    %c0_i32_1 = arith.constant 0 : i32
    return %arg2, %c0_i32, %c0_i32_0 : i32, i32, i32
  }
  func.func @transform_6(%arg0: i32, %arg1: i32, %arg2: i32) -> (i32, i32, i32) {
    %c0_i32 = arith.constant 0 : i32
    %c0_i32_0 = arith.constant 0 : i32
    %c0_i32_1 = arith.constant 0 : i32
    return %arg2, %c0_i32, %c0_i32_0 : i32, i32, i32
  }
  func.func @transform_7(%arg0: i32, %arg1: i32, %arg2: i32) -> (i32, i32, i32) {
    %c0_i32 = arith.constant 0 : i32
    %c0_i32_0 = arith.constant 0 : i32
    %c0_i32_1 = arith.constant 0 : i32
    return %arg2, %c0_i32, %c0_i32_0 : i32, i32, i32
  }
  func.func @transform_8(%arg0: i32, %arg1: i32, %arg2: i32) -> (i32, i32) {
    %c0_i32 = arith.constant 0 : i32
    %c0_i32_0 = arith.constant 0 : i32
    %c0_i32_1 = arith.constant 0 : i32
    return %c0_i32, %c0_i32_0 : i32, i32
  }
  func.func @transform_9(%arg0: i32, %arg1: i32, %arg2: i32) -> (i32, i32, i32) {
    %c0_i32 = arith.constant 0 : i32
    %c0_i32_0 = arith.constant 0 : i32
    return %arg0, %arg1, %c0_i32 : i32, i32, i32
  }
}

</mosaic_0001>

<llo_original>
// kernel: tpu_custom_call.1
$region0: #{tpu_custom_call.1}
  #allocation0 [shape = 'u32[]', space=smem, size = 0x4, offset = 0x4, fixed_abs, tag = 'smem constant byte address 0x4 - core index']
  #allocation1 [shape = 'u32[72,128]{1,0:T(1,128)}', space=vmem, size = 0x9000, scoped, tag = 'internal scratch']
  #allocation2 [shape = 'f32[8,1]{1,0:T(8,128)}', space=vmem, size = 0x1000, scoped, tag = 'scratch operand']
  #allocation3 [shape = 'f32[8,1]{1,0:T(8,128)}', space=vmem, size = 0x1000, scoped, tag = 'scratch operand']
  #allocation4 [shape = 'f32[8,8]{1,0:T(8,128)}', space=vmem, size = 0x1000, scoped, tag = 'scratch operand']
  #allocation5 [shape = 'f32[8,32]{1,0:T(8,128)}', space=vmem, size = 0x1000, scoped, tag = 'scratch operand']
  %s0 = inlined_call_operand.vmem [shape: bf16[2,8,32], index: 0, kind: input, shape index: {}]
  %s1 = inlined_call_operand.vmem [shape: bf16[4,32,8], index: 1, kind: input, shape index: {}]
  %s2 = inlined_call_operand.vmem [shape: f32[4,1,8], index: 2, kind: input, shape index: {}]
  %s3 = inlined_call_operand.vmem [shape: bf16[4,32,8], index: 3, kind: input, shape index: {}]
  %s4 = inlined_call_operand.vmem [shape: f32[4,1,8], index: 4, kind: input, shape index: {}]
  %s5 = inlined_call_operand.vmem [shape: bf16[4,32,8], index: 5, kind: input, shape index: {}]
  %s6 = inlined_call_operand.vmem [shape: f32[4,1,8], index: 6, kind: input, shape index: {}]
  %s7 = inlined_call_operand.vmem [shape: bf16[4,8,32], index: 7, kind: input, shape index: {}]
  %s8 = inlined_call_operand.vmem [shape: f32[1,32], index: 8, kind: input, shape index: {}]
  %s9 = inlined_call_operand.hbm [shape: f32[2,8,32], index: 9, kind: output, shape index: {}]
  %s10 = sld [smem:[#allocation0]]
  $region84: #{tpu_custom_call.1} parent=0
    _
  %s12 = ssub.s32 1, %s10
  %s13 = scalar_select 0, %s12, %s10
  $region1: #{tpu_custom_call.1} parent=0
    #allocation6 [shape = 'u8[8192]{0}', space=vmem, size = 0x2000, scoped, tag = 'output window, operand 0']
    #allocation7 [shape = 's32[2]{0}', space=sflag, size = 0x8, scoped, tag = 'scoped memory for tpu_custom_call.1']
    %14 = vsyncpa [#allocation7], 0
    %s15 = scalar_lea.sflag [#allocation7], 1
    %16 = vsyncpa %s15, 0
    loop: start=0, step=1, limit=10
    $region2: #{tpu_custom_call.1} parent=1 // loop_pre_header
      _
    $region3: #{tpu_custom_call.1} parent=1 // loop_header
      %s18 = sphi 0, %s22
      %p19 = scmp.ge.s32.totalorder %s18, 10
      %s25 = sphi 0, %s44
      %s26 = sphi 0, %s40
      %s27 = sphi 0, %s36
      %s28 = sphi 0, %s25
      %s29 = sphi 0, %s26
      %s30 = sphi 0, %s27
      %s31 = sphi 0, %s28
      %s32 = sphi 0, %s29
      %s33 = sphi 0, %s30
      %s47 = sphi 0, %s49
      %s50 = sphi 0, %s47
      %s51 = sphi 0, %s50
      %s67 = sphi 0, %s51
      %s73 = sphi 0, %s75
      %s76 = sphi 0, %s73
      %s77 = sphi 0, %s76
      %s93 = sphi 0, %s77
      %s99 = sphi 0, %s101
      %s102 = sphi 0, %s99
      %s103 = sphi 0, %s102
      %s119 = sphi 0, %s103
      %s125 = sphi 0, %s127
      %s128 = sphi 0, %s125
      %s129 = sphi 0, %s128
      %s145 = sphi 0, %s129
      %s151 = sphi 0, %s153
      %s154 = sphi 0, %s151
      %s155 = sphi 0, %s154
      %s171 = sphi 0, %s155
      %s177 = sphi 0, %s179
      %s180 = sphi 0, %s177
      %s181 = sphi 0, %s180
      %s197 = sphi 0, %s181
      %s203 = sphi 0, %s205
      %s206 = sphi 0, %s203
      %s207 = sphi 0, %s206
      %s223 = sphi 0, %s207
      %s229 = sphi 0, %s231
      %s232 = sphi 0, %s229
      %s233 = sphi 0, %s232
      %s249 = sphi 0, %s233
      %s253 = sphi 0, %s253
      %s255 = sphi 0, %s253
      %s256 = sphi 0, %s255
      %s270 = sphi 0, %s256
      %s278 = sphi 0, %s280
      %s281 = sphi 0, %s278
      %s282 = sphi 0, %s281
      %s298 = sphi 0, %s282
    $region4: #{tpu_custom_call.1} parent=1 // loop_header_branch
      %21 = sbr.rel (%p19) target = $region8
    $region5: #{tpu_custom_call.1} parent=1 // loop_body
      %s23 = ssub.s32 %s18, 1
      %s24 = ssub.s32 %s18, 2
      %s34 = sadd.s32 1, %s27
      %p35 = scmp.ge.s32.totalorder %s34, 4
      %s36 = scalar_select %p35, 0, %s34
      %s37 = sadd.s32 1, %s26
      %s38 = scalar_select %p35, %s37, %s26
      %p39 = scmp.ge.s32.totalorder %s38, 1
      %s40 = scalar_select %p39, 0, %s38
      %s41 = sadd.s32 1, %s25
      %s42 = scalar_select %p39, %s41, %s25
      %p43 = scmp.ge.s32.totalorder %s42, 2
      %s44 = scalar_select %p43, 0, %s42
      %s45 = ssub.s32 %s25, %s44
      %p46 = scmp.eq.s32.totalorder %s45, 0
      %s48 = sadd.s32 %s47, 1
      %s49 = scalar_select %p46, %s47, %s48
      %p52 = pneg %p46
      %p53 = scmp.eq.s32.totalorder %s18, 7
      %p54 = por %p52, %p53
      %p55 = scmp.ne.s32.totalorder %s47, %s50
      %p56 = scmp.eq.s32.totalorder %s18, 0
      %p57 = por %p55, %p56
      %p58 = scmp.ne.s32.totalorder %s47, %s50
      %p59 = scmp.eq.s32.totalorder %s23, 7
      %p60 = por %p58, %p59
      %p61 = scmp.ne.s32.totalorder %s50, %s51
      %p62 = scmp.eq.s32.totalorder %s23, 0
      %p63 = por %p61, %p62
      %p64 = scmp.ne.s32.totalorder %s50, %s51
      %p65 = scmp.eq.s32.totalorder %s24, 7
      %p66 = por %p64, %p65
      %p68 = scmp.ne.s32.totalorder %s51, %s67
      %p69 = scmp.eq.s32.totalorder %s24, 0
      %p70 = por %p68, %p69
      %s71 = ssub.s32 %s27, %s36
      %p72 = scmp.eq.s32.totalorder %s71, 0
      %s74 = sadd.s32 %s73, 1
      %s75 = scalar_select %p72, %s73, %s74
      %p78 = pneg %p72
      %p79 = scmp.eq.s32.totalorder %s18, 7
      %p80 = por %p78, %p79
      %p81 = scmp.ne.s32.totalorder %s73, %s76
      %p82 = scmp.eq.s32.totalorder %s18, 0
      %p83 = por %p81, %p82
      %p84 = scmp.ne.s32.totalorder %s73, %s76
      %p85 = scmp.eq.s32.totalorder %s23, 7
      %p86 = por %p84, %p85
      %p87 = scmp.ne.s32.totalorder %s76, %s77
      %p88 = scmp.eq.s32.totalorder %s23, 0
      %p89 = por %p87, %p88
      %p90 = scmp.ne.s32.totalorder %s76, %s77
      %p91 = scmp.eq.s32.totalorder %s24, 7
      %p92 = por %p90, %p91
      %p94 = scmp.ne.s32.totalorder %s77, %s93
      %p95 = scmp.eq.s32.totalorder %s24, 0
      %p96 = por %p94, %p95
      %s97 = ssub.s32 %s27, %s36
      %p98 = scmp.eq.s32.totalorder %s97, 0
      %s100 = sadd.s32 %s99, 1
      %s101 = scalar_select %p98, %s99, %s100
      %p104 = pneg %p98
      %p105 = scmp.eq.s32.totalorder %s18, 7
      %p106 = por %p104, %p105
      %p107 = scmp.ne.s32.totalorder %s99, %s102
      %p108 = scmp.eq.s32.totalorder %s18, 0
      %p109 = por %p107, %p108
      %p110 = scmp.ne.s32.totalorder %s99, %s102
      %p111 = scmp.eq.s32.totalorder %s23, 7
      %p112 = por %p110, %p111
      %p113 = scmp.ne.s32.totalorder %s102, %s103
      %p114 = scmp.eq.s32.totalorder %s23, 0
      %p115 = por %p113, %p114
      %p116 = scmp.ne.s32.totalorder %s102, %s103
      %p117 = scmp.eq.s32.totalorder %s24, 7
      %p118 = por %p116, %p117
      %p120 = scmp.ne.s32.totalorder %s103, %s119
      %p121 = scmp.eq.s32.totalorder %s24, 0
      %p122 = por %p120, %p121
      %s123 = ssub.s32 %s27, %s36
      %p124 = scmp.eq.s32.totalorder %s123, 0
      %s126 = sadd.s32 %s125, 1
      %s127 = scalar_select %p124, %s125, %s126
      %p130 = pneg %p124
      %p131 = scmp.eq.s32.totalorder %s18, 7
      %p132 = por %p130, %p131
      %p133 = scmp.ne.s32.totalorder %s125, %s128
      %p134 = scmp.eq.s32.totalorder %s18, 0
      %p135 = por %p133, %p134
      %p136 = scmp.ne.s32.totalorder %s125, %s128
      %p137 = scmp.eq.s32.totalorder %s23, 7
      %p138 = por %p136, %p137
      %p139 = scmp.ne.s32.totalorder %s128, %s129
      %p140 = scmp.eq.s32.totalorder %s23, 0
      %p141 = por %p139, %p140
      %p142 = scmp.ne.s32.totalorder %s128, %s129
      %p143 = scmp.eq.s32.totalorder %s24, 7
      %p144 = por %p142, %p143
      %p146 = scmp.ne.s32.totalorder %s129, %s145
      %p147 = scmp.eq.s32.totalorder %s24, 0
      %p148 = por %p146, %p147
      %s149 = ssub.s32 %s27, %s36
      %p150 = scmp.eq.s32.totalorder %s149, 0
      %s152 = sadd.s32 %s151, 1
      %s153 = scalar_select %p150, %s151, %s152
      %p156 = pneg %p150
      %p157 = scmp.eq.s32.totalorder %s18, 7
      %p158 = por %p156, %p157
      %p159 = scmp.ne.s32.totalorder %s151, %s154
      %p160 = scmp.eq.s32.totalorder %s18, 0
      %p161 = por %p159, %p160
      %p162 = scmp.ne.s32.totalorder %s151, %s154
      %p163 = scmp.eq.s32.totalorder %s23, 7
      %p164 = por %p162, %p163
      %p165 = scmp.ne.s32.totalorder %s154, %s155
      %p166 = scmp.eq.s32.totalorder %s23, 0
      %p167 = por %p165, %p166
      %p168 = scmp.ne.s32.totalorder %s154, %s155
      %p169 = scmp.eq.s32.totalorder %s24, 7
      %p170 = por %p168, %p169
      %p172 = scmp.ne.s32.totalorder %s155, %s171
      %p173 = scmp.eq.s32.totalorder %s24, 0
      %p174 = por %p172, %p173
      %s175 = ssub.s32 %s27, %s36
      %p176 = scmp.eq.s32.totalorder %s175, 0
      %s178 = sadd.s32 %s177, 1
      %s179 = scalar_select %p176, %s177, %s178
      %p182 = pneg %p176
      %p183 = scmp.eq.s32.totalorder %s18, 7
      %p184 = por %p182, %p183
      %p185 = scmp.ne.s32.totalorder %s177, %s180
      %p186 = scmp.eq.s32.totalorder %s18, 0
      %p187 = por %p185, %p186
      %p188 = scmp.ne.s32.totalorder %s177, %s180
      %p189 = scmp.eq.s32.totalorder %s23, 7
      %p190 = por %p188, %p189
      %p191 = scmp.ne.s32.totalorder %s180, %s181
      %p192 = scmp.eq.s32.totalorder %s23, 0
      %p193 = por %p191, %p192
      %p194 = scmp.ne.s32.totalorder %s180, %s181
      %p195 = scmp.eq.s32.totalorder %s24, 7
      %p196 = por %p194, %p195
      %p198 = scmp.ne.s32.totalorder %s181, %s197
      %p199 = scmp.eq.s32.totalorder %s24, 0
      %p200 = por %p198, %p199
      %s201 = ssub.s32 %s27, %s36
      %p202 = scmp.eq.s32.totalorder %s201, 0
      %s204 = sadd.s32 %s203, 1
      %s205 = scalar_select %p202, %s203, %s204
      %p208 = pneg %p202
      %p209 = scmp.eq.s32.totalorder %s18, 7
      %p210 = por %p208, %p209
      %p211 = scmp.ne.s32.totalorder %s203, %s206
      %p212 = scmp.eq.s32.totalorder %s18, 0
      %p213 = por %p211, %p212
      %p214 = scmp.ne.s32.totalorder %s203, %s206
      %p215 = scmp.eq.s32.totalorder %s23, 7
      %p216 = por %p214, %p215
      %p217 = scmp.ne.s32.totalorder %s206, %s207
      %p218 = scmp.eq.s32.totalorder %s23, 0
      %p219 = por %p217, %p218
      %p220 = scmp.ne.s32.totalorder %s206, %s207
      %p221 = scmp.eq.s32.totalorder %s24, 7
      %p222 = por %p220, %p221
      %p224 = scmp.ne.s32.totalorder %s207, %s223
      %p225 = scmp.eq.s32.totalorder %s24, 0
      %p226 = por %p224, %p225
      %s227 = ssub.s32 %s27, %s36
      %p228 = scmp.eq.s32.totalorder %s227, 0
      %s230 = sadd.s32 %s229, 1
      %s231 = scalar_select %p228, %s229, %s230
      %p234 = pneg %p228
      %p235 = scmp.eq.s32.totalorder %s18, 7
      %p236 = por %p234, %p235
      %p237 = scmp.ne.s32.totalorder %s229, %s232
      %p238 = scmp.eq.s32.totalorder %s18, 0
      %p239 = por %p237, %p238
      %p240 = scmp.ne.s32.totalorder %s229, %s232
      %p241 = scmp.eq.s32.totalorder %s23, 7
      %p242 = por %p240, %p241
      %p243 = scmp.ne.s32.totalorder %s232, %s233
      %p244 = scmp.eq.s32.totalorder %s23, 0
      %p245 = por %p243, %p244
      %p246 = scmp.ne.s32.totalorder %s232, %s233
      %p247 = scmp.eq.s32.totalorder %s24, 7
      %p248 = por %p246, %p247
      %p250 = scmp.ne.s32.totalorder %s233, %s249
      %p251 = scmp.eq.s32.totalorder %s24, 0
      %p252 = por %p250, %p251
      %s254 = sadd.s32 %s253, 1
      %p257 = scmp.eq.s32.totalorder %s18, 7
      %p258 = scmp.ne.s32.totalorder %s253, %s255
      %p259 = scmp.eq.s32.totalorder %s18, 0
      %p260 = por %p258, %p259
      %p261 = scmp.ne.s32.totalorder %s253, %s255
      %p262 = scmp.eq.s32.totalorder %s23, 7
      %p263 = por %p261, %p262
      %p264 = scmp.ne.s32.totalorder %s255, %s256
      %p265 = scmp.eq.s32.totalorder %s23, 0
      %p266 = por %p264, %p265
      %p267 = scmp.ne.s32.totalorder %s255, %s256
      %p268 = scmp.eq.s32.totalorder %s24, 7
      %p269 = por %p267, %p268
      %p271 = scmp.ne.s32.totalorder %s256, %s270
      %p272 = scmp.eq.s32.totalorder %s24, 0
      %p273 = por %p271, %p272
      %s274 = ssub.s32 %s25, %s44
      %s275 = ssub.s32 %s26, %s40
      %s276 = sor.u32 %s274, %s275
      %p277 = scmp.eq.s32.totalorder %s276, 0
      %s279 = sadd.s32 %s278, 1
      %s280 = scalar_select %p277, %s278, %s279
      %p283 = pneg %p277
      %p284 = scmp.eq.s32.totalorder %s18, 7
      %p285 = por %p283, %p284
      %p286 = scmp.ne.s32.totalorder %s278, %s281
      %p287 = scmp.eq.s32.totalorder %s18, 0
      %p288 = por %p286, %p287
      %p289 = scmp.ne.s32.totalorder %s278, %s281
      %p290 = scmp.eq.s32.totalorder %s23, 7
      %p291 = por %p289, %p290
      %p292 = scmp.ne.s32.totalorder %s281, %s282
      %p293 = scmp.eq.s32.totalorder %s23, 0
      %p294 = por %p292, %p293
      %p295 = scmp.ne.s32.totalorder %s281, %s282
      %p296 = scmp.eq.s32.totalorder %s24, 7
      %p297 = por %p295, %p296
      %p299 = scmp.ne.s32.totalorder %s282, %s298
      %p300 = scmp.eq.s32.totalorder %s24, 0
      %p301 = por %p299, %p300
      %p302 = scmp.le.s32.totalorder 1, %s18
      %p303 = scmp.lt.s32.totalorder %s18, 9
      %p304 = pnand %p302, %p303
      %p305 = pneg %p304
      // Predicated region
      $region9: #{tpu_custom_call.1} parent=5 // pred_check
        _
      $region10: #{tpu_custom_call.1} parent=5 // pred_check_branch
        %307 = sbr.rel (%p304) target = $region12
      $region11: #{tpu_custom_call.1} parent=5 // pred_region
        %s308 = ssub.s32 %s18, 1
        // Predicated region
        $region13: #{tpu_custom_call.1} parent=11 // pred_check
          %p309 = pneg %p266
        $region14: #{tpu_custom_call.1} parent=11 // pred_check_branch
          %311 = sbr.rel (%p309) target = $region16
        $region15: #{tpu_custom_call.1} parent=11 // pred_region
          _
        $region16: #{tpu_custom_call.1} parent=11 // pred_fallthru
          _
      $region12: #{tpu_custom_call.1} parent=5 // pred_fallthru
        _
      %p312 = scmp.lt.s32.totalorder %s18, 8
      // Predicated region
      $region17: #{tpu_custom_call.1} parent=5 // pred_check
        %p313 = pneg %p312
      $region18: #{tpu_custom_call.1} parent=5 // pred_check_branch
        %315 = sbr.rel (%p313) target = $region20
      $region19: #{tpu_custom_call.1} parent=5 // pred_region
        // Predicated region
        $region21: #{tpu_custom_call.1} parent=19 // pred_check
          %p316 = pneg %p57
        $region22: #{tpu_custom_call.1} parent=19 // pred_check_branch
          %318 = sbr.rel (%p316) target = $region24
        $region23: #{tpu_custom_call.1} parent=19 // pred_region
          %p319 = scmp.lt.s32.totalorder %s25, 1
          %s320 = scalar_select %p319, %s25, 1
          %s321 = smul.addr %s320, 4
          %s322 = scalar_lea.vmem %s0, %s321
        $region24: #{tpu_custom_call.1} parent=19 // pred_fallthru
          _
        // Predicated region
        $region25: #{tpu_custom_call.1} parent=19 // pred_check
          %p323 = pneg %p83
        $region26: #{tpu_custom_call.1} parent=19 // pred_check_branch
          %325 = sbr.rel (%p323) target = $region28
        $region27: #{tpu_custom_call.1} parent=19 // pred_region
          %p326 = scmp.lt.s32.totalorder %s27, 3
          %s327 = scalar_select %p326, %s27, 3
          %s328 = smul.addr %s327, 4
          %s329 = smul.addr %s328, 4
          %s330 = scalar_lea.vmem %s1, %s329
        $region28: #{tpu_custom_call.1} parent=19 // pred_fallthru
          _
        // Predicated region
        $region29: #{tpu_custom_call.1} parent=19 // pred_check
          %p331 = pneg %p109
        $region30: #{tpu_custom_call.1} parent=19 // pred_check_branch
          %333 = sbr.rel (%p331) target = $region32
        $region31: #{tpu_custom_call.1} parent=19 // pred_region
          %p334 = scmp.lt.s32.totalorder %s27, 3
          %s335 = scalar_select %p334, %s27, 3
          %s336 = scalar_lea.vmem %s2, %s335
        $region32: #{tpu_custom_call.1} parent=19 // pred_fallthru
          _
        // Predicated region
        $region33: #{tpu_custom_call.1} parent=19 // pred_check
          %p337 = pneg %p135
        $region34: #{tpu_custom_call.1} parent=19 // pred_check_branch
          %339 = sbr.rel (%p337) target = $region36
        $region35: #{tpu_custom_call.1} parent=19 // pred_region
          %p340 = scmp.lt.s32.totalorder %s27, 3
          %s341 = scalar_select %p340, %s27, 3
          %s342 = smul.addr %s341, 4
          %s343 = smul.addr %s342, 4
          %s344 = scalar_lea.vmem %s3, %s343
        $region36: #{tpu_custom_call.1} parent=19 // pred_fallthru
          _
        // Predicated region
        $region37: #{tpu_custom_call.1} parent=19 // pred_check
          %p345 = pneg %p161
        $region38: #{tpu_custom_call.1} parent=19 // pred_check_branch
          %347 = sbr.rel (%p345) target = $region40
        $region39: #{tpu_custom_call.1} parent=19 // pred_region
          %p348 = scmp.lt.s32.totalorder %s27, 3
          %s349 = scalar_select %p348, %s27, 3
          %s350 = scalar_lea.vmem %s4, %s349
        $region40: #{tpu_custom_call.1} parent=19 // pred_fallthru
          _
        // Predicated region
        $region41: #{tpu_custom_call.1} parent=19 // pred_check
          %p351 = pneg %p187
        $region42: #{tpu_custom_call.1} parent=19 // pred_check_branch
          %353 = sbr.rel (%p351) target = $region44
        $region43: #{tpu_custom_call.1} parent=19 // pred_region
          %p354 = scmp.lt.s32.totalorder %s27, 3
          %s355 = scalar_select %p354, %s27, 3
          %s356 = smul.addr %s355, 4
          %s357 = smul.addr %s356, 4
          %s358 = scalar_lea.vmem %s5, %s357
        $region44: #{tpu_custom_call.1} parent=19 // pred_fallthru
          _
        // Predicated region
        $region45: #{tpu_custom_call.1} parent=19 // pred_check
          %p359 = pneg %p213
        $region46: #{tpu_custom_call.1} parent=19 // pred_check_branch
          %361 = sbr.rel (%p359) target = $region48
        $region47: #{tpu_custom_call.1} parent=19 // pred_region
          %p362 = scmp.lt.s32.totalorder %s27, 3
          %s363 = scalar_select %p362, %s27, 3
          %s364 = scalar_lea.vmem %s6, %s363
        $region48: #{tpu_custom_call.1} parent=19 // pred_fallthru
          _
        // Predicated region
        $region49: #{tpu_custom_call.1} parent=19 // pred_check
          %p365 = pneg %p239
        $region50: #{tpu_custom_call.1} parent=19 // pred_check_branch
          %367 = sbr.rel (%p365) target = $region52
        $region51: #{tpu_custom_call.1} parent=19 // pred_region
          %p368 = scmp.lt.s32.totalorder %s27, 3
          %s369 = scalar_select %p368, %s27, 3
          %s370 = smul.addr %s369, 4
          %s371 = scalar_lea.vmem %s7, %s370
        $region52: #{tpu_custom_call.1} parent=19 // pred_fallthru
          _
      $region20: #{tpu_custom_call.1} parent=5 // pred_fallthru
        _
      %p372 = scmp.le.s32.totalorder 1, %s18
      %p373 = scmp.lt.s32.totalorder %s18, 9
      %p374 = pnand %p372, %p373
      %p375 = pneg %p374
      // Predicated region
      $region53: #{tpu_custom_call.1} parent=5 // pred_check
        _
      $region54: #{tpu_custom_call.1} parent=5 // pred_check_branch
        %377 = sbr.rel (%p374) target = $region56
      $region55: #{tpu_custom_call.1} parent=5 // pred_region
        %s378 = ssub.s32 %s18, 1
        %p379 = scmp.lt.s32.totalorder %s28, 1
        %s380 = scalar_select %p379, %s28, 1
        %s381 = smul.addr %s380, 4
        %s382 = scalar_lea.vmem %s0, %s381
        %p383 = pneg %p63
        %p384 = pneg %p60
        %p385 = scmp.lt.s32.totalorder %s30, 3
        %s386 = scalar_select %p385, %s30, 3
        %s387 = smul.addr %s386, 4
        %s388 = smul.addr %s387, 4
        %s389 = scalar_lea.vmem %s1, %s388
        %p390 = pneg %p89
        %p391 = pneg %p86
        %p392 = scmp.lt.s32.totalorder %s30, 3
        %s393 = scalar_select %p392, %s30, 3
        %s394 = scalar_lea.vmem %s2, %s393
        %p395 = pneg %p115
        %p396 = pneg %p112
        %p397 = scmp.lt.s32.totalorder %s30, 3
        %s398 = scalar_select %p397, %s30, 3
        %s399 = smul.addr %s398, 4
        %s400 = smul.addr %s399, 4
        %s401 = scalar_lea.vmem %s3, %s400
        %p402 = pneg %p141
        %p403 = pneg %p138
        %p404 = scmp.lt.s32.totalorder %s30, 3
        %s405 = scalar_select %p404, %s30, 3
        %s406 = scalar_lea.vmem %s4, %s405
        %p407 = pneg %p167
        %p408 = pneg %p164
        %p409 = scmp.lt.s32.totalorder %s30, 3
        %s410 = scalar_select %p409, %s30, 3
        %s411 = smul.addr %s410, 4
        %s412 = smul.addr %s411, 4
        %s413 = scalar_lea.vmem %s5, %s412
        %p414 = pneg %p193
        %p415 = pneg %p190
        %p416 = scmp.lt.s32.totalorder %s30, 3
        %s417 = scalar_select %p416, %s30, 3
        %s418 = scalar_lea.vmem %s6, %s417
        %p419 = pneg %p219
        %p420 = pneg %p216
        %p421 = scmp.lt.s32.totalorder %s30, 3
        %s422 = scalar_select %p421, %s30, 3
        %s423 = smul.addr %s422, 4
        %s424 = scalar_lea.vmem %s7, %s423
        %p425 = pneg %p245
        %p426 = pneg %p242
        %p427 = pneg %p266
        %p428 = pneg %p263
        %p429 = pneg %p294
        %p430 = pneg %p291
        %s431 = sand.u32 %s281, 1
        %s432 = scalar_lea.sflag [#allocation7], %s431
        %s433 = sand.u32 %s281, 1
        %s434 = smul.addr %s433, 8
        %s435 = scalar_lea.vmem [#allocation6], %s434
        %p436 = scmp.lt.s32.totalorder %s28, 1
        %s437 = scalar_select %p436, %s28, 1
        %s438 = smul.addr %s437, 4
        %s439 = scalar_lea.vmem %s0, %s438
        %p440 = scmp.lt.s32.totalorder %s30, 3
        %s441 = scalar_select %p440, %s30, 3
        %s442 = smul.addr %s441, 4
        %s443 = smul.addr %s442, 4
        %s444 = scalar_lea.vmem %s1, %s443
        %p445 = scmp.lt.s32.totalorder %s30, 3
        %s446 = scalar_select %p445, %s30, 3
        %s447 = scalar_lea.vmem %s2, %s446
        %p448 = scmp.lt.s32.totalorder %s30, 3
        %s449 = scalar_select %p448, %s30, 3
        %s450 = smul.addr %s449, 4
        %s451 = smul.addr %s450, 4
        %s452 = scalar_lea.vmem %s3, %s451
        %p453 = scmp.lt.s32.totalorder %s30, 3
        %s454 = scalar_select %p453, %s30, 3
        %s455 = scalar_lea.vmem %s4, %s454
        %p456 = scmp.lt.s32.totalorder %s30, 3
        %s457 = scalar_select %p456, %s30, 3
        %s458 = smul.addr %s457, 4
        %s459 = smul.addr %s458, 4
        %s460 = scalar_lea.vmem %s5, %s459
        %p461 = scmp.lt.s32.totalorder %s30, 3
        %s462 = scalar_select %p461, %s30, 3
        %s463 = scalar_lea.vmem %s6, %s462
        %p464 = scmp.lt.s32.totalorder %s30, 3
        %s465 = scalar_select %p464, %s30, 3
        %s466 = smul.addr %s465, 4
        %s467 = scalar_lea.vmem %s7, %s466
        %p469 = scmp.eq.s32.totalorder %s30, 0
        // Predicated region
        $region57: #{tpu_custom_call.1} parent=55 // pred_check
          %p470 = pneg %p469
        $region58: #{tpu_custom_call.1} parent=55 // pred_check_branch
          %472 = sbr.rel (%p470) target = $region60
        $region59: #{tpu_custom_call.1} parent=55 // pred_region
          %vm473 = vcmask 261120
          %474 = vst.msk [vmem:[#allocation5] sm:$0xff] %vm473, 0.0
        $region60: #{tpu_custom_call.1} parent=55 // pred_fallthru
          _
        %s475 = smul.u32 %s29, 8
        %s476 = sshra.s32 %s475, 3
        %s477 = sand.u32 %s475, 7
        %s478 = smul.addr %s476, 4
        %s479 = scalar_lea.vmem %s439, %s478
        %v480 = vld [vmem:[%s479] sm:$0xf]
        %v481 = vld [vmem:[%s444] sm:$0xf]
        %v482 = vld [vmem:[%s444 + $0x4] sm:$0xf]
        %v483 = vld [vmem:[%s444 + $0x8] sm:$0xf]
        %v484 = vld [vmem:[%s444 + $0xc] sm:$0xf]
        %v485 = vld [vmem:[%s447] sm:$0x1]
        %v487 = vperm.slane %v485, 0
        %v493 = vunpack.c.l.b16 %v481
        %v494 = vunpack.c.l.b16 %v482
        %v495 = vunpack.c.l.b16 %v483
        %v496 = vunpack.c.l.b16 %v484
        %v497 = vpack.c.b16 %v494, %v493
        %v498 = vpack.c.b16 %v496, %v495
        %vm501 = vcmask 261120
        %v503 = vsel %vm501, %v480, 0
        %505 = vmatpush.bf16.msra.mxu0 0
        %506 = vmatpush.bf16.msra.mxu0 0
        %507 = vmatpush.bf16.msra.mxu0 0
        %508 = vmatpush.bf16.msra.mxu0 0
        %509 = vmatpush.bf16.msra.mxu0 0
        %510 = vmatpush.bf16.msra.mxu0 0
        %511 = vmatpush.bf16.msra.mxu0 %v498
        %512 = vmatpush.bf16.msra.mxu0 %v497
        %513 = vmatmul.bf16.gmra.mxu0 %v503
        %v514 = vpop.f32.mrf.mxu0
        %v515 = vadd.f32 %v487, %v514
        %v516 = vpop.f32.mrf.mxu0
        %517 = vdwg.mxu0
        %v518 = vmul.f32 %v515, 0.35355338
        %v519 = vpack.c.bf16 %v518, %v518
        %vm520 = vcmask 7168
        %521 = vst.msk [vmem:[#allocation2] sm:$0xff] %vm520, -1e+30
        %522 = vst.msk [vmem:[#allocation3] sm:$0xff] %vm520, 0.0
        %vm523 = vcmask 64512
        %524 = vst.msk [vmem:[#allocation4] sm:$0xff] %vm523, 0.0
        %v525 = vlaneseq
        %v526 = vshrl.u32 %v525, 7
        %v527 = vstv %s475
        %v528 = vadd.s32 %v527, %v526
        %s529 = sadd.s32 %s29, 1
        // While loop
        $region61: #{tpu_custom_call.1} parent=55 // loop_pre_header
          _
        $region62: #{tpu_custom_call.1} parent=55 // loop_header
          %s531 = sphi 0, %s533
          %p532 = scmp.ge.s32.totalorder %s531, %s529
        $region63: #{tpu_custom_call.1} parent=55 // loop_header_branch
          %535 = sbr.rel (%p532) target = $region67
        $region64: #{tpu_custom_call.1} parent=55 // loop_body
          %s536 = smul.u32 %s531, 8
          %s537 = sshra.s32 %s536, 3
          %s538 = sand.u32 %s536, 7
          %s539 = smul.addr %s537, 4
          %s540 = scalar_lea.vmem %s439, %s539
          %v541 = vld [vmem:[%s540] sm:$0xf]
          %v542 = vld [vmem:[%s452] sm:$0xf]
          %v543 = vld [vmem:[%s452 + $0x4] sm:$0xf]
          %v544 = vld [vmem:[%s452 + $0x8] sm:$0xf]
          %v545 = vld [vmem:[%s452 + $0xc] sm:$0xf]
          %v546 = vld [vmem:[%s455] sm:$0x1]
          %v548 = vperm.slane %v546, 0
          %v554 = vunpack.c.l.b16 %v542
          %v555 = vunpack.c.l.b16 %v543
          %v556 = vunpack.c.l.b16 %v544
          %v557 = vunpack.c.l.b16 %v545
          %v558 = vpack.c.b16 %v555, %v554
          %v559 = vpack.c.b16 %v557, %v556
          %v563 = vsel %vm501, %v541, 0
          %565 = vmatpush.bf16.msra.mxu0 0
          %566 = vmatpush.bf16.msra.mxu0 0
          %567 = vmatpush.bf16.msra.mxu0 0
          %568 = vmatpush.bf16.msra.mxu0 0
          %569 = vmatpush.bf16.msra.mxu0 0
          %570 = vmatpush.bf16.msra.mxu0 0
          %571 = vmatpush.bf16.msra.mxu0 %v559
          %572 = vmatpush.bf16.msra.mxu0 %v558
          %573 = vmatmul.bf16.gmra.mxu0 %v563
          %v574 = vpop.f32.mrf.mxu0
          %v575 = vadd.f32 %v548, %v574
          %v576 = vpop.f32.mrf.mxu0
          %577 = vdwg.mxu0
          %v578 = vpack.c.bf16 %v575, %v575
          %v579 = vld [vmem:[%s460] sm:$0xf]
          %v580 = vld [vmem:[%s460 + $0x4] sm:$0xf]
          %v581 = vld [vmem:[%s460 + $0x8] sm:$0xf]
          %v582 = vld [vmem:[%s460 + $0xc] sm:$0xf]
          %v583 = vld [vmem:[%s463] sm:$0x1]
          %v585 = vperm.slane %v583, 0
          %v591 = vunpack.c.l.b16 %v579
          %v592 = vunpack.c.l.b16 %v580
          %v593 = vunpack.c.l.b16 %v581
          %v594 = vunpack.c.l.b16 %v582
          %v595 = vpack.c.b16 %v592, %v591
          %v596 = vpack.c.b16 %v594, %v593
          %599 = vmatpush.bf16.msra.mxu0 0
          %600 = vmatpush.bf16.msra.mxu0 0
          %601 = vmatpush.bf16.msra.mxu0 0
          %602 = vmatpush.bf16.msra.mxu0 0
          %603 = vmatpush.bf16.msra.mxu0 0
          %604 = vmatpush.bf16.msra.mxu0 0
          %605 = vmatpush.bf16.msra.mxu0 %v596
          %606 = vmatpush.bf16.msra.mxu0 %v595
          %607 = vmatmul.bf16.gmra.mxu0 %v563
          %v608 = vpop.f32.mrf.mxu0
          %v609 = vadd.f32 %v585, %v608
          %v610 = vpop.f32.mrf.mxu0
          %611 = vdwg.mxu0
          %v612 = vpack.c.bf16 %v609, %v609
          %v613 = vlaneseq
          %v614 = vand.u32 %v613, 127
          %v615 = vstv %s536
          %v616 = vadd.s32 %v615, %v614
          %vm617 = vcmp.ge.s32.totalorder %v528, %v616
          %v618 = vsel %vm617, 0.0, -1e+30
          %v620 = vsel %vm523, %v519, 0
          %v623 = vsel %vm523, %v578, 0
          %625 = vmatpush.bf16.xpose.msra.mxu0 0
          %626 = vmatpush.bf16.xpose.msra.mxu0 0
          %627 = vmatpush.bf16.xpose.msra.mxu0 0
          %628 = vmatpush.bf16.xpose.msra.mxu0 0
          %629 = vmatpush.bf16.xpose.msra.mxu0 0
          %630 = vmatpush.bf16.xpose.msra.mxu0 0
          %631 = vmatpush.bf16.xpose.msra.mxu0 0
          %632 = vmatpush.bf16.xpose.msra.mxu0 %v623
          %633 = vmatmul.bf16.gmra.mxu0 %v620
          %v634 = vpop.f32.mrf.mxu0
          %v635 = vadd.f32 %v618, %v634
          %v636 = vpop.f32.mrf.mxu0
          %637 = vdwg.mxu0
          %v638 = vld [vmem:[#allocation2] sm:$0xff]
          %v639 = vsel %vm523, %v635, -inf
          %640 = vmax.xlane.f32.xlu0 %v639
          %v641 = vpop.xlane.xlu0 %640
          %v642 = vmax.f32 %v638, %v641
          %v643 = vsub.f32 %v638, %v642
          %v644 = vmul.f32 %v643, 1.442695
          %v645 = vpow.pop %v644
          %647 = vset.pattern.permute.xlu0 0
          %648 = vperm.xlu0 %647, %v642
          %v649 = vpop.permute.xlu0 %648
          %v651 = vsub.f32 %v635, %v649
          %v652 = vmul.f32 %v651, 1.442695
          %v653 = vpow.pop %v652
          %v654 = vld [vmem:[#allocation3] sm:$0xff]
          %v655 = vmul.f32 %v645, %v654
          %v656 = vsel %vm523, %v653, 0.0
          %657 = vadd.xlane.f32.xlu0 %v656
          %v658 = vpop.xlane.xlu0 %657
          %v659 = vadd.f32 %v655, %v658
          %660 = vst.msk [vmem:[#allocation3] sm:$0xff] %vm520, %v659
          %v661 = vld [vmem:[#allocation4] sm:$0xff]
          %663 = vset.pattern.permute.xlu0 0
          %664 = vperm.xlu0 %663, %v645
          %v665 = vpop.permute.xlu0 %664
          %v667 = vmul.f32 %v665, %v661
          %v668 = vpack.c.bf16 %v653, %v653
          %v670 = vsel %vm523, %v668, 0
          %vm672 = vcmask 1043456
          %v674 = vsel %vm672, %v612, 0
          %676 = vmatpush.bf16.msra.mxu0 0
          %677 = vmatpush.bf16.msra.mxu0 0
          %678 = vmatpush.bf16.msra.mxu0 0
          %679 = vmatpush.bf16.msra.mxu0 0
          %680 = vmatpush.bf16.msra.mxu0 0
          %681 = vmatpush.bf16.msra.mxu0 0
          %682 = vmatpush.bf16.msra.mxu0 0
          %683 = vmatpush.bf16.msra.mxu0 %v674
          %684 = vmatmul.bf16.gmra.mxu0 %v670
          %v685 = vpop.f32.mrf.mxu0
          %v686 = vadd.f32 0.0, %v685
          %v687 = vpop.f32.mrf.mxu0
          %688 = vdwg.mxu0
          %v689 = vadd.f32 %v667, %v686
          %690 = vst.msk [vmem:[#allocation4] sm:$0xff] %vm523, %v689
          %691 = vst.msk [vmem:[#allocation2] sm:$0xff] %vm520, %v642
        $region65: #{tpu_custom_call.1} parent=55 // loop_footer
          %s533 = sadd.s32 %s531, 1
        $region66: #{tpu_custom_call.1} parent=55 // loop_footer_branch
          %530 = sbr.rel target = $region62
        $region67: #{tpu_custom_call.1} parent=55 // loop_exit
          _
        %v692 = vld [vmem:[#allocation3] sm:$0xff]
        %v693 = vrcp.pop %v692
        %v694 = vld [vmem:[#allocation4] sm:$0xff]
        %696 = vset.pattern.permute.xlu0 0
        %697 = vperm.xlu0 %696, %v693
        %v698 = vpop.permute.xlu0 %697
        %v700 = vmul.f32 %v694, %v698
        %v701 = vpack.c.bf16 %v700, %v700
        %v702 = vld [vmem:[#allocation5] sm:$0xff]
        %v703 = vld [vmem:[%s467] sm:$0xf]
        %v705 = vsel %vm523, %v701, 0
        %vm707 = vcmask 1043456
        %v709 = vsel %vm707, %v703, 0
        %711 = vmatpush.bf16.msra.mxu0 0
        %712 = vmatpush.bf16.msra.mxu0 0
        %713 = vmatpush.bf16.msra.mxu0 0
        %714 = vmatpush.bf16.msra.mxu0 0
        %715 = vmatpush.bf16.msra.mxu0 0
        %716 = vmatpush.bf16.msra.mxu0 0
        %717 = vmatpush.bf16.msra.mxu0 0
        %718 = vmatpush.bf16.msra.mxu0 %v709
        %719 = vmatmul.bf16.gmra.mxu0 %v705
        %v720 = vpop.f32.mrf.mxu0
        %v721 = vadd.f32 0.0, %v720
        %v722 = vpop.f32.mrf.mxu0
        %723 = vdwg.mxu0
        %v724 = vadd.f32 %v702, %v721
        %725 = vst.msk [vmem:[#allocation5] sm:$0xff] %vm501, %v724
        %p726 = scmp.eq.s32.totalorder %s30, 3
        // Predicated region
        $region68: #{tpu_custom_call.1} parent=55 // pred_check
          %p727 = pneg %p726
        $region69: #{tpu_custom_call.1} parent=55 // pred_check_branch
          %729 = sbr.rel (%p727) target = $region71
        $region70: #{tpu_custom_call.1} parent=55 // pred_region
          %v730 = vld [vmem:[#allocation5] sm:$0xff]
          %v731 = vld [vmem:[%s8] sm:$0x1]
          %v733 = vperm.slane %v731, 0
          %v735 = vadd.f32 %v730, %v733
          %736 = vst.msk [vmem:[%s435] sm:$0xff] %vm501, %v735
        $region71: #{tpu_custom_call.1} parent=55 // pred_fallthru
          _
        %s737 = sand.u32 %s281, 1
        %s738 = scalar_lea.sflag [#allocation7], %s737
        %s739 = sand.u32 %s281, 1
        %s740 = smul.addr %s739, 8
        %s741 = scalar_lea.vmem [#allocation6], %s740
        // Predicated region
        $region72: #{tpu_custom_call.1} parent=55 // pred_check
          %p742 = pneg %p291
        $region73: #{tpu_custom_call.1} parent=55 // pred_check_branch
          %744 = sbr.rel (%p742) target = $region75
        $region74: #{tpu_custom_call.1} parent=55 // pred_region
          %746 = vsyncadd %s738, 0
          %s747 = sadd.s32 %s29, %s28
          %s748 = smul.addr %s747, 8
          %s749 = scalar_lea.hbm %s9, %s748
          %s751 = sshll.u32 %s741, 4
          %s752 = int_to_ptr.vmem [resolvable:$true] %s751
          %s753 = sshll.u32 %s749, 4
          %s754 = int_to_ptr.hbm [resolvable:$true] %s753
          %756 = dma.vmem_to_hbm [thread:$0]  %s752, 128, %s754, %s738
        $region75: #{tpu_custom_call.1} parent=55 // pred_fallthru
          _
      $region56: #{tpu_custom_call.1} parent=5 // pred_fallthru
        _
      %p757 = scmp.le.s32.totalorder 2, %s18
      // Predicated region
      $region76: #{tpu_custom_call.1} parent=5 // pred_check
        %p758 = pneg %p757
      $region77: #{tpu_custom_call.1} parent=5 // pred_check_branch
        %760 = sbr.rel (%p758) target = $region79
      $region78: #{tpu_custom_call.1} parent=5 // pred_region
        %s761 = ssub.s32 %s18, 2
        // Predicated region
        $region80: #{tpu_custom_call.1} parent=78 // pred_check
          %p762 = pneg %p297
        $region81: #{tpu_custom_call.1} parent=78 // pred_check_branch
          %764 = sbr.rel (%p762) target = $region83
        $region82: #{tpu_custom_call.1} parent=78 // pred_region
          %s765 = sand.u32 %s282, 1
          %s766 = scalar_lea.sflag [#allocation7], %s765
          %s767 = sand.u32 %s282, 1
          %s768 = smul.addr %s767, 8
          %s769 = scalar_lea.vmem [#allocation6], %s768
          %771 = dma.done %s766, 128
        $region83: #{tpu_custom_call.1} parent=78 // pred_fallthru
          _
      $region79: #{tpu_custom_call.1} parent=5 // pred_fallthru
        _
    $region6: #{tpu_custom_call.1} parent=1 // loop_footer
      %s22 = sadd.s32 1, %s18
    $region7: #{tpu_custom_call.1} parent=1 // loop_footer_branch
      %17 = sbr.rel target = $region3
    $region8: #{tpu_custom_call.1} parent=1 // loop_exit
      _
    %772 = vsyncpa [#allocation7], 1
    %s773 = scalar_lea.sflag [#allocation7], 1
    %774 = vsyncpa %s773, 1

</llo_original>
